<compile_context>
chip_gen: v5e
topology: v5e:2x2
jax: 0.10.0
libtpu: 0.0.40
codegen_flags: <defaults>
</compile_context>

<pallas_src>
import functools

import jax
import jax.numpy as jnp
from jax import lax
from jax.experimental import pallas as pl
from jax.experimental.pallas import tpu as pltpu


def _mha_kernel(q_ref, k_ref, v_ref,
                wq_ref, wk_ref, wv_ref, wo_ref,
                bq_ref, bk_ref, bv_ref, bo_ref,
                o_ref, *, num_heads):
    # Full-width projections (MXU, f32 accumulation). Inputs kept at native
    # dtype; preferred_element_type forces an f32 accumulator.
    q = q_ref[...]
    k = k_ref[...]
    v = v_ref[...]

    Q = jnp.dot(q, wq_ref[...], preferred_element_type=jnp.float32) + bq_ref[...]
    K = jnp.dot(k, wk_ref[...], preferred_element_type=jnp.float32) + bk_ref[...]
    V = jnp.dot(v, wv_ref[...], preferred_element_type=jnp.float32) + bv_ref[...]

    D = Q.shape[-1]
    hd = D // num_heads
    scale = 1.0 / (hd ** 0.5)

    # Per-head attention over the batch axis (scores are (B, B)).  Static
    # Python unroll; per-head slices are static lane slices of the projected
    # activations, so no per-head grid/DMA/pipeline overhead is paid.
    ctx_parts = []
    for h in range(num_heads):
        lo = h * hd
        q_h = Q[:, lo:lo + hd]                       # (B, hd), f32
        k_h = K[:, lo:lo + hd]
        v_h = V[:, lo:lo + hd]

        # scores = Q_h @ K_h^T without materializing a transpose.
        s = lax.dot_general(q_h, k_h, (((1,), (1,)), ((), ())),
                            preferred_element_type=jnp.float32) * scale  # (B, B)

        # Numerically stable softmax over the last (lane) axis.  Exact divide
        # kept (vs pl.reciprocal(approx=True)) to hold the strict self-check
        # tolerance against the f32 reference.
        m = jnp.max(s, axis=-1, keepdims=True)
        p = jnp.exp(s - m)
        p = p / jnp.sum(p, axis=-1, keepdims=True)

        ctx_parts.append(jnp.dot(p, v_h, preferred_element_type=jnp.float32))

    # Concatenated heads -> one full-width output projection (B,D) x (D,D),
    # accumulated in f32; single store of the output tile.
    ctx = jnp.concatenate(ctx_parts, axis=-1)                            # (B, D)
    out = jnp.dot(ctx, wo_ref[...], preferred_element_type=jnp.float32)
    out = out + bo_ref[...]
    o_ref[...] = out.astype(o_ref.dtype)


def multi_head_attention_2d(q, k, v, wq_t, bq, wk_t, bk, wv_t, bv, wo_t, bo,
                            *, num_heads):
    """q/k/v: (B, D). w*_t: (D, D) pre-transposed so y = x @ w_t + b."""
    B, D = q.shape
    assert D % num_heads == 0, "input_dim must be divisible by num_heads"

    # Biases as (1, D): lane-dense 2-D VMEM tiles that broadcast over the
    # batch (sublane) axis inside the kernel.
    bq2 = bq.reshape(1, D)
    bk2 = bk.reshape(1, D)
    bv2 = bv.reshape(1, D)
    bo2 = bo.reshape(1, D)

    kernel = functools.partial(_mha_kernel, num_heads=num_heads)
    vmem = pl.BlockSpec(memory_space=pltpu.MemorySpace.VMEM)

    # Single fused step: no grid, everything VMEM-resident.
    return pl.pallas_call(
        kernel,
        out_shape=jax.ShapeDtypeStruct((B, D), q.dtype),
        in_specs=[vmem] * 11,
        out_specs=vmem,
    )(q, k, v, wq_t, wk_t, wv_t, wo_t, bq2, bk2, bv2, bo2)


def _reference(q, k, v, wq_t, bq, wk_t, bk, wv_t, bv, wo_t, bo, num_heads):
    B, D = q.shape
    hd = D // num_heads
    hp = jax.lax.Precision.HIGHEST
    Q = jnp.dot(q, wq_t, precision=hp) + bq
    K = jnp.dot(k, wk_t, precision=hp) + bk
    V = jnp.dot(v, wv_t, precision=hp) + bv
    Qh = Q.reshape(B, num_heads, hd).transpose(1, 0, 2)   # (H, B, hd)
    Kh = K.reshape(B, num_heads, hd).transpose(1, 0, 2)
    Vh = V.reshape(B, num_heads, hd).transpose(1, 0, 2)
    scores = jnp.einsum("hbd,hcd->hbc", Qh, Kh, precision=hp) / (hd ** 0.5)
    attn = jax.nn.softmax(scores, axis=-1)
    ctx = jnp.einsum("hbc,hcd->hbd", attn, Vh, precision=hp)
    ctx = ctx.transpose(1, 0, 2).reshape(B, D)
    return jnp.dot(ctx, wo_t, precision=hp) + bo


if __name__ == "__main__":
    key = jax.random.PRNGKey(0)
    B, D, H = 8, 32, 4        # batch=8, input_dim=32, num_heads=4 -> head_dim=8

    ks = jax.random.split(key, 11)
    q = jax.random.normal(ks[0], (B, D), dtype=jnp.float32)
    k = jax.random.normal(ks[1], (B, D), dtype=jnp.float32)
    v = jax.random.normal(ks[2], (B, D), dtype=jnp.float32)

    w_scale = 1.0 / (D ** 0.5)   # nn.Linear-like init; weights stored transposed
    wq_t = jax.random.normal(ks[3], (D, D), jnp.float32) * w_scale
    wk_t = jax.random.normal(ks[4], (D, D), jnp.float32) * w_scale
    wv_t = jax.random.normal(ks[5], (D, D), jnp.float32) * w_scale
    wo_t = jax.random.normal(ks[6], (D, D), jnp.float32) * w_scale
    bq = jax.random.normal(ks[7], (D,), jnp.float32) * w_scale
    bk = jax.random.normal(ks[8], (D,), jnp.float32) * w_scale
    bv = jax.random.normal(ks[9], (D,), jnp.float32) * w_scale
    bo = jax.random.normal(ks[10], (D,), jnp.float32) * w_scale

    out = multi_head_attention_2d(q, k, v, wq_t, bq, wk_t, bk, wv_t, bv,
                                  wo_t, bo, num_heads=H)
    jax.block_until_ready(out)

    ref = _reference(q, k, v, wq_t, bq, wk_t, bk, wv_t, bv, wo_t, bo, H)
    max_err = jnp.max(jnp.abs(out - ref))
    assert jnp.allclose(out, ref, atol=1e-4, rtol=1e-4), (
        f"mismatch vs reference: max abs err = {max_err}")

    print("KERNEL_OK")
</pallas_src>

<mosaic_0001>
module attributes {stable_mosaic.version = 11 : i64} {
  func.func @_mha_kernel(%arg0: memref<8x32xf32, #tpu.memory_space<vmem>>, %arg1: memref<8x32xf32, #tpu.memory_space<vmem>>, %arg2: memref<8x32xf32, #tpu.memory_space<vmem>>, %arg3: memref<32x32xf32, #tpu.memory_space<vmem>>, %arg4: memref<32x32xf32, #tpu.memory_space<vmem>>, %arg5: memref<32x32xf32, #tpu.memory_space<vmem>>, %arg6: memref<32x32xf32, #tpu.memory_space<vmem>>, %arg7: memref<1x32xf32, #tpu.memory_space<vmem>>, %arg8: memref<1x32xf32, #tpu.memory_space<vmem>>, %arg9: memref<1x32xf32, #tpu.memory_space<vmem>>, %arg10: memref<1x32xf32, #tpu.memory_space<vmem>>, %arg11: memref<8x32xf32, #tpu.memory_space<vmem>>) attributes {dimension_semantics = [], scalar_prefetch = 0 : i64, scratch_operands = 0 : i64, tpu.core_type = #tpu.core_type<tc>} {
    %c0 = arith.constant 0 : index
    %c0_0 = arith.constant 0 : index
    %0 = vector.load %arg0[%c0, %c0_0] : memref<8x32xf32, #tpu.memory_space<vmem>>, vector<8x32xf32>
    %c0_1 = arith.constant 0 : index
    %c0_2 = arith.constant 0 : index
    %1 = vector.load %arg1[%c0_1, %c0_2] : memref<8x32xf32, #tpu.memory_space<vmem>>, vector<8x32xf32>
    %c0_3 = arith.constant 0 : index
    %c0_4 = arith.constant 0 : index
    %2 = vector.load %arg2[%c0_3, %c0_4] : memref<8x32xf32, #tpu.memory_space<vmem>>, vector<8x32xf32>
    %c0_5 = arith.constant 0 : index
    %c0_6 = arith.constant 0 : index
    %3 = vector.load %arg3[%c0_5, %c0_6] : memref<32x32xf32, #tpu.memory_space<vmem>>, vector<32x32xf32>
    %cst = arith.constant dense<0.000000e+00> : vector<8x32xf32>
    %4 = tpu.matmul %0, %3, %cst {dimension_numbers = #tpu.dot_dimension_numbers<[1], [0], [0], [1], [0, 0, 1, 1], [], []>} : vector<8x32xf32>, vector<32x32xf32>, vector<8x32xf32> -> vector<8x32xf32>
    %c0_7 = arith.constant 0 : index
    %c0_8 = arith.constant 0 : index
    %5 = vector.load %arg7[%c0_7, %c0_8] : memref<1x32xf32, #tpu.memory_space<vmem>>, vector<1x32xf32>
    %6 = vector.broadcast %5 : vector<1x32xf32> to vector<8x32xf32>
    %7 = arith.addf %4, %6 : vector<8x32xf32>
    %c0_9 = arith.constant 0 : index
    %c0_10 = arith.constant 0 : index
    %8 = vector.load %arg4[%c0_9, %c0_10] : memref<32x32xf32, #tpu.memory_space<vmem>>, vector<32x32xf32>
    %cst_11 = arith.constant dense<0.000000e+00> : vector<8x32xf32>
    %9 = tpu.matmul %1, %8, %cst_11 {dimension_numbers = #tpu.dot_dimension_numbers<[1], [0], [0], [1], [0, 0, 1, 1], [], []>} : vector<8x32xf32>, vector<32x32xf32>, vector<8x32xf32> -> vector<8x32xf32>
    %c0_12 = arith.constant 0 : index
    %c0_13 = arith.constant 0 : index
    %10 = vector.load %arg8[%c0_12, %c0_13] : memref<1x32xf32, #tpu.memory_space<vmem>>, vector<1x32xf32>
    %11 = vector.broadcast %10 : vector<1x32xf32> to vector<8x32xf32>
    %12 = arith.addf %9, %11 : vector<8x32xf32>
    %c0_14 = arith.constant 0 : index
    %c0_15 = arith.constant 0 : index
    %13 = vector.load %arg5[%c0_14, %c0_15] : memref<32x32xf32, #tpu.memory_space<vmem>>, vector<32x32xf32>
    %cst_16 = arith.constant dense<0.000000e+00> : vector<8x32xf32>
    %14 = tpu.matmul %2, %13, %cst_16 {dimension_numbers = #tpu.dot_dimension_numbers<[1], [0], [0], [1], [0, 0, 1, 1], [], []>} : vector<8x32xf32>, vector<32x32xf32>, vector<8x32xf32> -> vector<8x32xf32>
    %c0_17 = arith.constant 0 : index
    %c0_18 = arith.constant 0 : index
    %15 = vector.load %arg9[%c0_17, %c0_18] : memref<1x32xf32, #tpu.memory_space<vmem>>, vector<1x32xf32>
    %16 = vector.broadcast %15 : vector<1x32xf32> to vector<8x32xf32>
    %17 = arith.addf %14, %16 : vector<8x32xf32>
    %18 = vector.extract_strided_slice %7 {offsets = [0, 0], sizes = [8, 8], strides = [1, 1]} : vector<8x32xf32> to vector<8x8xf32>
    %19 = vector.extract_strided_slice %12 {offsets = [0, 0], sizes = [8, 8], strides = [1, 1]} : vector<8x32xf32> to vector<8x8xf32>
    %20 = vector.extract_strided_slice %17 {offsets = [0, 0], sizes = [8, 8], strides = [1, 1]} : vector<8x32xf32> to vector<8x8xf32>
    %cst_19 = arith.constant dense<0.000000e+00> : vector<8x8xf32>
    %21 = tpu.matmul %18, %19, %cst_19 {dimension_numbers = #tpu.dot_dimension_numbers<[1], [1], [0], [0], [0, 0, 1, 0], [], []>} : vector<8x8xf32>, vector<8x8xf32>, vector<8x8xf32> -> vector<8x8xf32>
    %cst_20 = arith.constant 0.353553385 : f32
    %22 = vector.broadcast %cst_20 : f32 to vector<8x8xf32>
    %23 = arith.mulf %21, %22 : vector<8x8xf32>
    %cst_21 = arith.constant dense<0xFF800000> : vector<8xf32>
    %24 = vector.multi_reduction <maximumf>, %23, %cst_21 [1] : vector<8x8xf32> to vector<8xf32>
    %25 = vector.shape_cast %24 : vector<8xf32> to vector<8x1xf32>
    %26 = vector.broadcast %25 : vector<8x1xf32> to vector<8x8xf32>
    %27 = arith.subf %23, %26 : vector<8x8xf32>
    %28 = math.exp %27 : vector<8x8xf32>
    %cst_22 = arith.constant dense<0.000000e+00> : vector<8xf32>
    %29 = vector.multi_reduction <add>, %28, %cst_22 [1] : vector<8x8xf32> to vector<8xf32>
    %30 = vector.shape_cast %29 : vector<8xf32> to vector<8x1xf32>
    %31 = vector.broadcast %30 : vector<8x1xf32> to vector<8x8xf32>
    %32 = arith.divf %28, %31 : vector<8x8xf32>
    %cst_23 = arith.constant dense<0.000000e+00> : vector<8x8xf32>
    %33 = tpu.matmul %32, %20, %cst_23 {dimension_numbers = #tpu.dot_dimension_numbers<[1], [0], [0], [1], [0, 0, 1, 1], [], []>} : vector<8x8xf32>, vector<8x8xf32>, vector<8x8xf32> -> vector<8x8xf32>
    %34 = vector.extract_strided_slice %7 {offsets = [0, 8], sizes = [8, 8], strides = [1, 1]} : vector<8x32xf32> to vector<8x8xf32>
    %35 = vector.extract_strided_slice %12 {offsets = [0, 8], sizes = [8, 8], strides = [1, 1]} : vector<8x32xf32> to vector<8x8xf32>
    %36 = vector.extract_strided_slice %17 {offsets = [0, 8], sizes = [8, 8], strides = [1, 1]} : vector<8x32xf32> to vector<8x8xf32>
    %cst_24 = arith.constant dense<0.000000e+00> : vector<8x8xf32>
    %37 = tpu.matmul %34, %35, %cst_24 {dimension_numbers = #tpu.dot_dimension_numbers<[1], [1], [0], [0], [0, 0, 1, 0], [], []>} : vector<8x8xf32>, vector<8x8xf32>, vector<8x8xf32> -> vector<8x8xf32>
    %cst_25 = arith.constant 0.353553385 : f32
    %38 = vector.broadcast %cst_25 : f32 to vector<8x8xf32>
    %39 = arith.mulf %37, %38 : vector<8x8xf32>
    %cst_26 = arith.constant dense<0xFF800000> : vector<8xf32>
    %40 = vector.multi_reduction <maximumf>, %39, %cst_26 [1] : vector<8x8xf32> to vector<8xf32>
    %41 = vector.shape_cast %40 : vector<8xf32> to vector<8x1xf32>
    %42 = vector.broadcast %41 : vector<8x1xf32> to vector<8x8xf32>
    %43 = arith.subf %39, %42 : vector<8x8xf32>
    %44 = math.exp %43 : vector<8x8xf32>
    %cst_27 = arith.constant dense<0.000000e+00> : vector<8xf32>
    %45 = vector.multi_reduction <add>, %44, %cst_27 [1] : vector<8x8xf32> to vector<8xf32>
    %46 = vector.shape_cast %45 : vector<8xf32> to vector<8x1xf32>
    %47 = vector.broadcast %46 : vector<8x1xf32> to vector<8x8xf32>
    %48 = arith.divf %44, %47 : vector<8x8xf32>
    %cst_28 = arith.constant dense<0.000000e+00> : vector<8x8xf32>
    %49 = tpu.matmul %48, %36, %cst_28 {dimension_numbers = #tpu.dot_dimension_numbers<[1], [0], [0], [1], [0, 0, 1, 1], [], []>} : vector<8x8xf32>, vector<8x8xf32>, vector<8x8xf32> -> vector<8x8xf32>
    %50 = vector.extract_strided_slice %7 {offsets = [0, 16], sizes = [8, 8], strides = [1, 1]} : vector<8x32xf32> to vector<8x8xf32>
    %51 = vector.extract_strided_slice %12 {offsets = [0, 16], sizes = [8, 8], strides = [1, 1]} : vector<8x32xf32> to vector<8x8xf32>
    %52 = vector.extract_strided_slice %17 {offsets = [0, 16], sizes = [8, 8], strides = [1, 1]} : vector<8x32xf32> to vector<8x8xf32>
    %cst_29 = arith.constant dense<0.000000e+00> : vector<8x8xf32>
    %53 = tpu.matmul %50, %51, %cst_29 {dimension_numbers = #tpu.dot_dimension_numbers<[1], [1], [0], [0], [0, 0, 1, 0], [], []>} : vector<8x8xf32>, vector<8x8xf32>, vector<8x8xf32> -> vector<8x8xf32>
    %cst_30 = arith.constant 0.353553385 : f32
    %54 = vector.broadcast %cst_30 : f32 to vector<8x8xf32>
    %55 = arith.mulf %53, %54 : vector<8x8xf32>
    %cst_31 = arith.constant dense<0xFF800000> : vector<8xf32>
    %56 = vector.multi_reduction <maximumf>, %55, %cst_31 [1] : vector<8x8xf32> to vector<8xf32>
    %57 = vector.shape_cast %56 : vector<8xf32> to vector<8x1xf32>
    %58 = vector.broadcast %57 : vector<8x1xf32> to vector<8x8xf32>
    %59 = arith.subf %55, %58 : vector<8x8xf32>
    %60 = math.exp %59 : vector<8x8xf32>
    %cst_32 = arith.constant dense<0.000000e+00> : vector<8xf32>
    %61 = vector.multi_reduction <add>, %60, %cst_32 [1] : vector<8x8xf32> to vector<8xf32>
    %62 = vector.shape_cast %61 : vector<8xf32> to vector<8x1xf32>
    %63 = vector.broadcast %62 : vector<8x1xf32> to vector<8x8xf32>
    %64 = arith.divf %60, %63 : vector<8x8xf32>
    %cst_33 = arith.constant dense<0.000000e+00> : vector<8x8xf32>
    %65 = tpu.matmul %64, %52, %cst_33 {dimension_numbers = #tpu.dot_dimension_numbers<[1], [0], [0], [1], [0, 0, 1, 1], [], []>} : vector<8x8xf32>, vector<8x8xf32>, vector<8x8xf32> -> vector<8x8xf32>
    %66 = vector.extract_strided_slice %7 {offsets = [0, 24], sizes = [8, 8], strides = [1, 1]} : vector<8x32xf32> to vector<8x8xf32>
    %67 = vector.extract_strided_slice %12 {offsets = [0, 24], sizes = [8, 8], strides = [1, 1]} : vector<8x32xf32> to vector<8x8xf32>
    %68 = vector.extract_strided_slice %17 {offsets = [0, 24], sizes = [8, 8], strides = [1, 1]} : vector<8x32xf32> to vector<8x8xf32>
    %cst_34 = arith.constant dense<0.000000e+00> : vector<8x8xf32>
    %69 = tpu.matmul %66, %67, %cst_34 {dimension_numbers = #tpu.dot_dimension_numbers<[1], [1], [0], [0], [0, 0, 1, 0], [], []>} : vector<8x8xf32>, vector<8x8xf32>, vector<8x8xf32> -> vector<8x8xf32>
    %cst_35 = arith.constant 0.353553385 : f32
    %70 = vector.broadcast %cst_35 : f32 to vector<8x8xf32>
    %71 = arith.mulf %69, %70 : vector<8x8xf32>
    %cst_36 = arith.constant dense<0xFF800000> : vector<8xf32>
    %72 = vector.multi_reduction <maximumf>, %71, %cst_36 [1] : vector<8x8xf32> to vector<8xf32>
    %73 = vector.shape_cast %72 : vector<8xf32> to vector<8x1xf32>
    %74 = vector.broadcast %73 : vector<8x1xf32> to vector<8x8xf32>
    %75 = arith.subf %71, %74 : vector<8x8xf32>
    %76 = math.exp %75 : vector<8x8xf32>
    %cst_37 = arith.constant dense<0.000000e+00> : vector<8xf32>
    %77 = vector.multi_reduction <add>, %76, %cst_37 [1] : vector<8x8xf32> to vector<8xf32>
    %78 = vector.shape_cast %77 : vector<8xf32> to vector<8x1xf32>
    %79 = vector.broadcast %78 : vector<8x1xf32> to vector<8x8xf32>
    %80 = arith.divf %76, %79 : vector<8x8xf32>
    %cst_38 = arith.constant dense<0.000000e+00> : vector<8x8xf32>
    %81 = tpu.matmul %80, %68, %cst_38 {dimension_numbers = #tpu.dot_dimension_numbers<[1], [0], [0], [1], [0, 0, 1, 1], [], []>} : vector<8x8xf32>, vector<8x8xf32>, vector<8x8xf32> -> vector<8x8xf32>
    %82 = tpu.concatenate %33, %49, %65, %81 in 1 : vector<8x8xf32>, vector<8x8xf32>, vector<8x8xf32>, vector<8x8xf32> -> vector<8x32xf32>
    %c0_39 = arith.constant 0 : index
    %c0_40 = arith.constant 0 : index
    %83 = vector.load %arg6[%c0_39, %c0_40] : memref<32x32xf32, #tpu.memory_space<vmem>>, vector<32x32xf32>
    %cst_41 = arith.constant dense<0.000000e+00> : vector<8x32xf32>
    %84 = tpu.matmul %82, %83, %cst_41 {dimension_numbers = #tpu.dot_dimension_numbers<[1], [0], [0], [1], [0, 0, 1, 1], [], []>} : vector<8x32xf32>, vector<32x32xf32>, vector<8x32xf32> -> vector<8x32xf32>
    %c0_42 = arith.constant 0 : index
    %c0_43 = arith.constant 0 : index
    %85 = vector.load %arg10[%c0_42, %c0_43] : memref<1x32xf32, #tpu.memory_space<vmem>>, vector<1x32xf32>
    %86 = vector.broadcast %85 : vector<1x32xf32> to vector<8x32xf32>
    %87 = arith.addf %84, %86 : vector<8x32xf32>
    %c0_44 = arith.constant 0 : index
    %c0_45 = arith.constant 0 : index
    %88 = vector.load %arg11[%c0_44, %c0_45] : memref<8x32xf32, #tpu.memory_space<vmem>>, vector<8x32xf32>
    tpu.vector_store %arg11[%c0_44, %c0_45], %87 {strides = array<i32>} : memref<8x32xf32, #tpu.memory_space<vmem>>, vector<8x32xf32>,
    return
  }
}

</mosaic_0001>

<llo_original>
// kernel: tpu_custom_call.1
$region0: #{tpu_custom_call.1}
  #allocation0 [shape = 'u32[]', space=smem, size = 0x4, offset = 0x4, fixed_abs, tag = 'smem constant byte address 0x4 - core index']
  #allocation1 [shape = 'u32[72,128]{1,0:T(1,128)}', space=vmem, size = 0x9000, scoped, tag = 'internal scratch']
  %s0 = inlined_call_operand.hbm [shape: f32[8,32], index: 0, kind: input, shape index: {}]
  %s1 = inlined_call_operand.hbm [shape: f32[8,32], index: 1, kind: input, shape index: {}]
  %s2 = inlined_call_operand.hbm [shape: f32[8,32], index: 2, kind: input, shape index: {}]
  %s3 = inlined_call_operand.hbm [shape: f32[32,32], index: 3, kind: input, shape index: {}]
  %s4 = inlined_call_operand.hbm [shape: f32[32,32], index: 4, kind: input, shape index: {}]
  %s5 = inlined_call_operand.hbm [shape: f32[32,32], index: 5, kind: input, shape index: {}]
  %s6 = inlined_call_operand.hbm [shape: f32[32,32], index: 6, kind: input, shape index: {}]
  %s7 = inlined_call_operand.vmem [shape: f32[1,32], index: 7, kind: input, shape index: {}]
  %s8 = inlined_call_operand.vmem [shape: f32[1,32], index: 8, kind: input, shape index: {}]
  %s9 = inlined_call_operand.vmem [shape: f32[1,32], index: 9, kind: input, shape index: {}]
  %s10 = inlined_call_operand.vmem [shape: f32[1,32], index: 10, kind: input, shape index: {}]
  %s11 = inlined_call_operand.hbm [shape: f32[8,32], index: 11, kind: output, shape index: {}]
  %s12 = sld [smem:[#allocation0]]
  $region82: #{tpu_custom_call.1} parent=0
    _
  %s14 = ssub.s32 1, %s12
  %s15 = scalar_select 0, %s14, %s12
  $region1: #{tpu_custom_call.1} parent=0
    #allocation2 [shape = 'u8[4096]{0}', space=vmem, size = 0x1000, scoped, tag = 'input window, operand 0, single buffered']
    #allocation3 [shape = 's32[1]{0}', space=sflag, size = 0x4, scoped, tag = 'scoped memory for tpu_custom_call.1']
    #allocation4 [shape = 's32[1]{0}', space=sflag, size = 0x4, scoped, tag = 'scoped memory for tpu_custom_call.1']
    #allocation5 [shape = 'u8[4096]{0}', space=vmem, size = 0x1000, scoped, tag = 'input window, operand 1, single buffered']
    #allocation6 [shape = 's32[1]{0}', space=sflag, size = 0x4, scoped, tag = 'scoped memory for tpu_custom_call.1']
    #allocation7 [shape = 'u8[4096]{0}', space=vmem, size = 0x1000, scoped, tag = 'input window, operand 2, single buffered']
    #allocation8 [shape = 'u8[16384]{0}', space=vmem, size = 0x4000, scoped, tag = 'input window, operand 3, single buffered']
    #allocation9 [shape = 's32[1]{0}', space=sflag, size = 0x4, scoped, tag = 'scoped memory for tpu_custom_call.1']
    #allocation10 [shape = 'u8[16384]{0}', space=vmem, size = 0x4000, scoped, tag = 'input window, operand 4, single buffered']
    #allocation11 [shape = 'u8[16384]{0}', space=vmem, size = 0x4000, scoped, tag = 'input window, operand 5, single buffered']
    #allocation12 [shape = 's32[1]{0}', space=sflag, size = 0x4, scoped, tag = 'scoped memory for tpu_custom_call.1']
    #allocation13 [shape = 'u8[16384]{0}', space=vmem, size = 0x4000, scoped, tag = 'input window, operand 6, single buffered']
    #allocation14 [shape = 'u8[4096]{0}', space=vmem, size = 0x1000, scoped, tag = 'output window, operand 0, single buffered']
    %16 = vsyncpa [#allocation3], 0
    %17 = vsyncpa [#allocation6], 0
    %18 = vsyncpa [#allocation9], 0
    %19 = vsyncpa [#allocation12], 0
    %20 = vsyncpa [#allocation4], 0
    // Predicated region
    $region2: #{tpu_custom_call.1} parent=1 // pred_check
      _
    $region3: #{tpu_custom_call.1} parent=1 // pred_check_branch
      %22 = sbr.rel (0) target = $region5
    $region4: #{tpu_custom_call.1} parent=1 // pred_region
      %24 = vsyncadd [#allocation3], 0
      %s26 = sshll.u32 %s0, 4
      %s27 = int_to_ptr.hbm [resolvable:$true] %s26
      %s28 = sshll.u32 [#allocation2], 4
      %s29 = int_to_ptr.vmem [resolvable:$true] %s28
      %31 = dma.hbm_to_vmem [thread:$0]  %s27, 128, %s29, [#allocation3]
    $region5: #{tpu_custom_call.1} parent=1 // pred_fallthru
      _
    // Predicated region
    $region6: #{tpu_custom_call.1} parent=1 // pred_check
      _
    $region7: #{tpu_custom_call.1} parent=1 // pred_check_branch
      %33 = sbr.rel (0) target = $region9
    $region8: #{tpu_custom_call.1} parent=1 // pred_region
      %35 = vsyncadd [#allocation6], 0
      %s37 = sshll.u32 %s1, 4
      %s38 = int_to_ptr.hbm [resolvable:$true] %s37
      %s39 = sshll.u32 [#allocation5], 4
      %s40 = int_to_ptr.vmem [resolvable:$true] %s39
      %42 = dma.hbm_to_vmem [thread:$0]  %s38, 128, %s40, [#allocation6]
    $region9: #{tpu_custom_call.1} parent=1 // pred_fallthru
      _
    // Predicated region
    $region10: #{tpu_custom_call.1} parent=1 // pred_check
      _
    $region11: #{tpu_custom_call.1} parent=1 // pred_check_branch
      %44 = sbr.rel (0) target = $region13
    $region12: #{tpu_custom_call.1} parent=1 // pred_region
      %46 = vsyncadd [#allocation6], 0
      %s48 = sshll.u32 %s2, 4
      %s49 = int_to_ptr.hbm [resolvable:$true] %s48
      %s50 = sshll.u32 [#allocation7], 4
      %s51 = int_to_ptr.vmem [resolvable:$true] %s50
      %53 = dma.hbm_to_vmem [thread:$0]  %s49, 128, %s51, [#allocation6]
    $region13: #{tpu_custom_call.1} parent=1 // pred_fallthru
      _
    // Predicated region
    $region14: #{tpu_custom_call.1} parent=1 // pred_check
      _
    $region15: #{tpu_custom_call.1} parent=1 // pred_check_branch
      %55 = sbr.rel (0) target = $region17
    $region16: #{tpu_custom_call.1} parent=1 // pred_region
      %57 = vsyncadd [#allocation9], 0
      %s58 = sshll.u32 %s3, 4
      %s59 = int_to_ptr.hbm [resolvable:$true] %s58
      %s60 = sshll.u32 [#allocation8], 4
      %s61 = int_to_ptr.vmem [resolvable:$true] %s60
      %66 = dma.hbm_to_vmem [thread:$0]  %s59, 512, %s61, [#allocation9], 128, 128, 8
    $region17: #{tpu_custom_call.1} parent=1 // pred_fallthru
      _
    // Predicated region
    $region18: #{tpu_custom_call.1} parent=1 // pred_check
      _
    $region19: #{tpu_custom_call.1} parent=1 // pred_check_branch
      %68 = sbr.rel (0) target = $region21
    $region20: #{tpu_custom_call.1} parent=1 // pred_region
      %70 = vsyncadd [#allocation9], 0
      %s71 = sshll.u32 %s4, 4
      %s72 = int_to_ptr.hbm [resolvable:$true] %s71
      %s73 = sshll.u32 [#allocation10], 4
      %s74 = int_to_ptr.vmem [resolvable:$true] %s73
      %79 = dma.hbm_to_vmem [thread:$0]  %s72, 512, %s74, [#allocation9], 128, 128, 8
    $region21: #{tpu_custom_call.1} parent=1 // pred_fallthru
      _
    // Predicated region
    $region22: #{tpu_custom_call.1} parent=1 // pred_check
      _
    $region23: #{tpu_custom_call.1} parent=1 // pred_check_branch
      %81 = sbr.rel (0) target = $region25
    $region24: #{tpu_custom_call.1} parent=1 // pred_region
      %83 = vsyncadd [#allocation12], 0
      %s84 = sshll.u32 %s5, 4
      %s85 = int_to_ptr.hbm [resolvable:$true] %s84
      %s86 = sshll.u32 [#allocation11], 4
      %s87 = int_to_ptr.vmem [resolvable:$true] %s86
      %92 = dma.hbm_to_vmem [thread:$0]  %s85, 512, %s87, [#allocation12], 128, 128, 8
    $region25: #{tpu_custom_call.1} parent=1 // pred_fallthru
      _
    // Predicated region
    $region26: #{tpu_custom_call.1} parent=1 // pred_check
      _
    $region27: #{tpu_custom_call.1} parent=1 // pred_check_branch
      %94 = sbr.rel (0) target = $region29
    $region28: #{tpu_custom_call.1} parent=1 // pred_region
      %96 = vsyncadd [#allocation12], 0
      %s97 = sshll.u32 %s6, 4
      %s98 = int_to_ptr.hbm [resolvable:$true] %s97
      %s99 = sshll.u32 [#allocation13], 4
      %s100 = int_to_ptr.vmem [resolvable:$true] %s99
      %105 = dma.hbm_to_vmem [thread:$0]  %s98, 512, %s100, [#allocation12], 128, 128, 8
    $region29: #{tpu_custom_call.1} parent=1 // pred_fallthru
      _
    // Predicated region
    $region30: #{tpu_custom_call.1} parent=1 // pred_check
      _
    $region31: #{tpu_custom_call.1} parent=1 // pred_check_branch
      %107 = sbr.rel (0) target = $region33
    $region32: #{tpu_custom_call.1} parent=1 // pred_region
      _
    $region33: #{tpu_custom_call.1} parent=1 // pred_fallthru
      _
    // Predicated region
    $region34: #{tpu_custom_call.1} parent=1 // pred_check
      _
    $region35: #{tpu_custom_call.1} parent=1 // pred_check_branch
      %109 = sbr.rel (0) target = $region37
    $region36: #{tpu_custom_call.1} parent=1 // pred_region
      _
    $region37: #{tpu_custom_call.1} parent=1 // pred_fallthru
      _
    // Predicated region
    $region38: #{tpu_custom_call.1} parent=1 // pred_check
      _
    $region39: #{tpu_custom_call.1} parent=1 // pred_check_branch
      %111 = sbr.rel (0) target = $region41
    $region40: #{tpu_custom_call.1} parent=1 // pred_region
      _
    $region41: #{tpu_custom_call.1} parent=1 // pred_fallthru
      _
    // Predicated region
    $region42: #{tpu_custom_call.1} parent=1 // pred_check
      _
    $region43: #{tpu_custom_call.1} parent=1 // pred_check_branch
      %113 = sbr.rel (0) target = $region45
    $region44: #{tpu_custom_call.1} parent=1 // pred_region
      _
    $region45: #{tpu_custom_call.1} parent=1 // pred_fallthru
      _
    // Predicated region
    $region46: #{tpu_custom_call.1} parent=1 // pred_check
      _
    $region47: #{tpu_custom_call.1} parent=1 // pred_check_branch
      %115 = sbr.rel (0) target = $region49
    $region48: #{tpu_custom_call.1} parent=1 // pred_region
      %117 = dma.done [#allocation3], 128
    $region49: #{tpu_custom_call.1} parent=1 // pred_fallthru
      _
    // Predicated region
    $region50: #{tpu_custom_call.1} parent=1 // pred_check
      _
    $region51: #{tpu_custom_call.1} parent=1 // pred_check_branch
      %119 = sbr.rel (0) target = $region53
    $region52: #{tpu_custom_call.1} parent=1 // pred_region
      %121 = dma.done [#allocation6], 128
    $region53: #{tpu_custom_call.1} parent=1 // pred_fallthru
      _
    // Predicated region
    $region54: #{tpu_custom_call.1} parent=1 // pred_check
      _
    $region55: #{tpu_custom_call.1} parent=1 // pred_check_branch
      %123 = sbr.rel (0) target = $region57
    $region56: #{tpu_custom_call.1} parent=1 // pred_region
      %125 = dma.done [#allocation6], 128
    $region57: #{tpu_custom_call.1} parent=1 // pred_fallthru
      _
    // Predicated region
    $region58: #{tpu_custom_call.1} parent=1 // pred_check
      _
    $region59: #{tpu_custom_call.1} parent=1 // pred_check_branch
      %127 = sbr.rel (0) target = $region61
    $region60: #{tpu_custom_call.1} parent=1 // pred_region
      %129 = dma.done [#allocation9], 512
    $region61: #{tpu_custom_call.1} parent=1 // pred_fallthru
      _
    // Predicated region
    $region62: #{tpu_custom_call.1} parent=1 // pred_check
      _
    $region63: #{tpu_custom_call.1} parent=1 // pred_check_branch
      %131 = sbr.rel (0) target = $region65
    $region64: #{tpu_custom_call.1} parent=1 // pred_region
      %133 = dma.done [#allocation9], 512
    $region65: #{tpu_custom_call.1} parent=1 // pred_fallthru
      _
    // Predicated region
    $region66: #{tpu_custom_call.1} parent=1 // pred_check
      _
    $region67: #{tpu_custom_call.1} parent=1 // pred_check_branch
      %135 = sbr.rel (0) target = $region69
    $region68: #{tpu_custom_call.1} parent=1 // pred_region
      %137 = dma.done [#allocation12], 512
    $region69: #{tpu_custom_call.1} parent=1 // pred_fallthru
      _
    // Predicated region
    $region70: #{tpu_custom_call.1} parent=1 // pred_check
      _
    $region71: #{tpu_custom_call.1} parent=1 // pred_check_branch
      %139 = sbr.rel (0) target = $region73
    $region72: #{tpu_custom_call.1} parent=1 // pred_region
      %141 = dma.done [#allocation12], 512
    $region73: #{tpu_custom_call.1} parent=1 // pred_fallthru
      _
    %v142 = vld [vmem:[#allocation2] sm:$0xff]
    %v143 = vld [vmem:[#allocation5] sm:$0xff]
    %v144 = vld [vmem:[#allocation7] sm:$0xff]
    %v145 = vld [vmem:[#allocation8] sm:$0xff]
    %v146 = vld [vmem:[#allocation8 + $0x8] sm:$0xff]
    %v147 = vld [vmem:[#allocation8 + $0x10] sm:$0xff]
    %v148 = vld [vmem:[#allocation8 + $0x18] sm:$0xff]
    %v149 = vld [vmem:[%s7] sm:$0x1]
    %v151 = vperm.slane %v149, 0
    %vm153 = vcmask 261120
    %v155 = vsel %vm153, %v142, 0
    %157 = vmatpush.msra.mxu0 0.0
    %158 = vmatpush.msra.mxu0 0.0
    %159 = vmatpush.msra.mxu0 0.0
    %160 = vmatpush.msra.mxu0 0.0
    %161 = vmatpush.msra.mxu0 0.0
    %162 = vmatpush.msra.mxu0 0.0
    %163 = vmatpush.msra.mxu0 0.0
    %164 = vmatpush.msra.mxu0 0.0
    %165 = vmatpush.msra.mxu0 0.0
    %166 = vmatpush.msra.mxu0 0.0
    %167 = vmatpush.msra.mxu0 0.0
    %168 = vmatpush.msra.mxu0 0.0
    %169 = vmatpush.msra.mxu0 %v148
    %170 = vmatpush.msra.mxu0 %v147
    %171 = vmatpush.msra.mxu0 %v146
    %172 = vmatpush.msra.mxu0 %v145
    %173 = vmatmul.f32.gmra.mxu0 %v155
    %v174 = vpop.f32.mrf.mxu0
    %v175 = vadd.f32 %v151, %v174
    %176 = vdwg.mxu0
    %v177 = vld [vmem:[#allocation10] sm:$0xff]
    %v178 = vld [vmem:[#allocation10 + $0x8] sm:$0xff]
    %v179 = vld [vmem:[#allocation10 + $0x10] sm:$0xff]
    %v180 = vld [vmem:[#allocation10 + $0x18] sm:$0xff]
    %v181 = vld [vmem:[%s8] sm:$0x1]
    %v183 = vperm.slane %v181, 0
    %v186 = vsel %vm153, %v143, 0
    %188 = vmatpush.msra.mxu0 0.0
    %189 = vmatpush.msra.mxu0 0.0
    %190 = vmatpush.msra.mxu0 0.0
    %191 = vmatpush.msra.mxu0 0.0
    %192 = vmatpush.msra.mxu0 0.0
    %193 = vmatpush.msra.mxu0 0.0
    %194 = vmatpush.msra.mxu0 0.0
    %195 = vmatpush.msra.mxu0 0.0
    %196 = vmatpush.msra.mxu0 0.0
    %197 = vmatpush.msra.mxu0 0.0
    %198 = vmatpush.msra.mxu0 0.0
    %199 = vmatpush.msra.mxu0 0.0
    %200 = vmatpush.msra.mxu0 %v180
    %201 = vmatpush.msra.mxu0 %v179
    %202 = vmatpush.msra.mxu0 %v178
    %203 = vmatpush.msra.mxu0 %v177
    %204 = vmatmul.f32.gmra.mxu0 %v186
    %v205 = vpop.f32.mrf.mxu0
    %v206 = vadd.f32 %v183, %v205
    %207 = vdwg.mxu0
    %v208 = vld [vmem:[#allocation11] sm:$0xff]
    %v209 = vld [vmem:[#allocation11 + $0x8] sm:$0xff]
    %v210 = vld [vmem:[#allocation11 + $0x10] sm:$0xff]
    %v211 = vld [vmem:[#allocation11 + $0x18] sm:$0xff]
    %v212 = vld [vmem:[%s9] sm:$0x1]
    %v214 = vperm.slane %v212, 0
    %v217 = vsel %vm153, %v144, 0
    %219 = vmatpush.msra.mxu0 0.0
    %220 = vmatpush.msra.mxu0 0.0
    %221 = vmatpush.msra.mxu0 0.0
    %222 = vmatpush.msra.mxu0 0.0
    %223 = vmatpush.msra.mxu0 0.0
    %224 = vmatpush.msra.mxu0 0.0
    %225 = vmatpush.msra.mxu0 0.0
    %226 = vmatpush.msra.mxu0 0.0
    %227 = vmatpush.msra.mxu0 0.0
    %228 = vmatpush.msra.mxu0 0.0
    %229 = vmatpush.msra.mxu0 0.0
    %230 = vmatpush.msra.mxu0 0.0
    %231 = vmatpush.msra.mxu0 %v211
    %232 = vmatpush.msra.mxu0 %v210
    %233 = vmatpush.msra.mxu0 %v209
    %234 = vmatpush.msra.mxu0 %v208
    %235 = vmatmul.f32.gmra.mxu0 %v217
    %v236 = vpop.f32.mrf.mxu0
    %v237 = vadd.f32 %v214, %v236
    %238 = vdwg.mxu0
    %vm239 = vcmask 64512
    %v241 = vsel %vm239, %v175, 0
    %v244 = vsel %vm239, %v206, 0
    %246 = vmatpush.xpose.msra.mxu0 0.0
    %247 = vmatpush.xpose.msra.mxu0 0.0
    %248 = vmatpush.xpose.msra.mxu0 0.0
    %249 = vmatpush.xpose.msra.mxu0 0.0
    %250 = vmatpush.xpose.msra.mxu0 0.0
    %251 = vmatpush.xpose.msra.mxu0 0.0
    %252 = vmatpush.xpose.msra.mxu0 0.0
    %253 = vmatpush.xpose.msra.mxu0 0.0
    %254 = vmatpush.xpose.msra.mxu0 0.0
    %255 = vmatpush.xpose.msra.mxu0 0.0
    %256 = vmatpush.xpose.msra.mxu0 0.0
    %257 = vmatpush.xpose.msra.mxu0 0.0
    %258 = vmatpush.xpose.msra.mxu0 0.0
    %259 = vmatpush.xpose.msra.mxu0 0.0
    %260 = vmatpush.xpose.msra.mxu0 0.0
    %261 = vmatpush.xpose.msra.mxu0 %v244
    %262 = vmatmul.f32.gmra.mxu0 %v241
    %v263 = vpop.f32.mrf.mxu0
    %v264 = vadd.f32 0.0, %v263
    %265 = vdwg.mxu0
    %v266 = vmul.f32 %v264, 0.35355338
    %v267 = vsel %vm239, %v266, -inf
    %268 = vmax.xlane.f32.xlu0 %v267
    %v269 = vpop.xlane.xlu0 %268
    %v270 = vsub.f32 %v266, %v269
    %v271 = vmul.f32 %v270, 1.442695
    %v272 = vpow.pop %v271
    %v273 = vsel %vm239, %v272, 0.0
    %274 = vadd.xlane.f32.xlu0 %v273
    %v275 = vpop.xlane.xlu0 %274
    %v276 = vrcp.pop %v275
    %v277 = vmul.f32 %v275, %v276
    %v278 = vsub.f32 1.0, %v277
    %v279 = vmul.f32 %v276, %v278
    %v280 = vadd.f32 %v276, %v279
    %vm281 = vweird.f32 %v275
    %vm282 = vweird.f32 %v276
    %vm283 = vmor %vm281, %vm282
    %v284 = vsel %vm283, %v276, %v280
    %v285 = vand.u32 2147483647, %v275
    %vm286 = vcmp.eq.f32.partialorder %v285, 8.507059e+37
    %v287 = vand.u32 %v275, 2147483648
    %v288 = vor.u32 1.1754944e-38, %v287
    %v289 = vsel %vm286, %v288, %v284
    %v290 = vmul.f32 %v272, %v289
    %v292 = vsel %vm239, %v290, 0
    %294 = vmatpush.msra.mxu0 0.0
    %295 = vmatpush.msra.mxu0 0.0
    %296 = vmatpush.msra.mxu0 0.0
    %297 = vmatpush.msra.mxu0 0.0
    %298 = vmatpush.msra.mxu0 0.0
    %299 = vmatpush.msra.mxu0 0.0
    %300 = vmatpush.msra.mxu0 0.0
    %301 = vmatpush.msra.mxu0 0.0
    %302 = vmatpush.msra.mxu0 0.0
    %303 = vmatpush.msra.mxu0 0.0
    %304 = vmatpush.msra.mxu0 0.0
    %305 = vmatpush.msra.mxu0 0.0
    %306 = vmatpush.msra.mxu0 0.0
    %307 = vmatpush.msra.mxu0 0.0
    %308 = vmatpush.msra.mxu0 0.0
    %309 = vmatpush.msra.mxu0 %v237
    %310 = vmatmul.f32.gmra.mxu0 %v292
    %v311 = vpop.f32.mrf.mxu0
    %v312 = vadd.f32 0.0, %v311
    %313 = vdwg.mxu0
    %314 = vrot.lane.b32.xlu0 %v175, 120
    %v315 = vpop.permute.xlu0 %314
    %316 = vrot.lane.b32.xlu0 %v206, 120
    %v317 = vpop.permute.xlu0 %316
    %v318 = vsel %vm239, %v315, 0
    %v320 = vsel %vm239, %v317, 0
    %322 = vmatpush.xpose.msra.mxu0 0.0
    %323 = vmatpush.xpose.msra.mxu0 0.0
    %324 = vmatpush.xpose.msra.mxu0 0.0
    %325 = vmatpush.xpose.msra.mxu0 0.0
    %326 = vmatpush.xpose.msra.mxu0 0.0
    %327 = vmatpush.xpose.msra.mxu0 0.0
    %328 = vmatpush.xpose.msra.mxu0 0.0
    %329 = vmatpush.xpose.msra.mxu0 0.0
    %330 = vmatpush.xpose.msra.mxu0 0.0
    %331 = vmatpush.xpose.msra.mxu0 0.0
    %332 = vmatpush.xpose.msra.mxu0 0.0
    %333 = vmatpush.xpose.msra.mxu0 0.0
    %334 = vmatpush.xpose.msra.mxu0 0.0
    %335 = vmatpush.xpose.msra.mxu0 0.0
    %336 = vmatpush.xpose.msra.mxu0 0.0
    %337 = vmatpush.xpose.msra.mxu0 %v320
    %338 = vmatmul.f32.gmra.mxu0 %v318
    %v339 = vpop.f32.mrf.mxu0
    %v340 = vadd.f32 0.0, %v339
    %341 = vdwg.mxu0
    %v342 = vmul.f32 %v340, 0.35355338
    %v343 = vsel %vm239, %v342, -inf
    %344 = vmax.xlane.f32.xlu0 %v343
    %v345 = vpop.xlane.xlu0 %344
    %v346 = vsub.f32 %v342, %v345
    %v347 = vmul.f32 %v346, 1.442695
    %v348 = vpow.pop %v347
    %v349 = vsel %vm239, %v348, 0.0
    %350 = vadd.xlane.f32.xlu0 %v349
    %v351 = vpop.xlane.xlu0 %350
    %v352 = vrcp.pop %v351
    %v353 = vmul.f32 %v351, %v352
    %v354 = vsub.f32 1.0, %v353
    %v355 = vmul.f32 %v352, %v354
    %v356 = vadd.f32 %v352, %v355
    %vm357 = vweird.f32 %v351
    %vm358 = vweird.f32 %v352
    %vm359 = vmor %vm357, %vm358
    %v360 = vsel %vm359, %v352, %v356
    %v361 = vand.u32 2147483647, %v351
    %vm362 = vcmp.eq.f32.partialorder %v361, 8.507059e+37
    %v363 = vand.u32 %v351, 2147483648
    %v364 = vor.u32 1.1754944e-38, %v363
    %v365 = vsel %vm362, %v364, %v360
    %v366 = vmul.f32 %v348, %v365
    %368 = vrot.lane.b32.xlu0 %v237, 120
    %v369 = vpop.permute.xlu0 %368
    %v372 = vsel %vm239, %v366, 0
    %374 = vmatpush.msra.mxu0 0.0
    %375 = vmatpush.msra.mxu0 0.0
    %376 = vmatpush.msra.mxu0 0.0
    %377 = vmatpush.msra.mxu0 0.0
    %378 = vmatpush.msra.mxu0 0.0
    %379 = vmatpush.msra.mxu0 0.0
    %380 = vmatpush.msra.mxu0 0.0
    %381 = vmatpush.msra.mxu0 0.0
    %382 = vmatpush.msra.mxu0 0.0
    %383 = vmatpush.msra.mxu0 0.0
    %384 = vmatpush.msra.mxu0 0.0
    %385 = vmatpush.msra.mxu0 0.0
    %386 = vmatpush.msra.mxu0 0.0
    %387 = vmatpush.msra.mxu0 0.0
    %388 = vmatpush.msra.mxu0 0.0
    %389 = vmatpush.msra.mxu0 %v369
    %390 = vmatmul.f32.gmra.mxu0 %v372
    %v391 = vpop.f32.mrf.mxu0
    %v392 = vadd.f32 0.0, %v391
    %393 = vdwg.mxu0
    %394 = vrot.lane.b32.xlu0 %v175, 112
    %v395 = vpop.permute.xlu0 %394
    %396 = vrot.lane.b32.xlu0 %v206, 112
    %v397 = vpop.permute.xlu0 %396
    %v398 = vsel %vm239, %v395, 0
    %v400 = vsel %vm239, %v397, 0
    %402 = vmatpush.xpose.msra.mxu0 0.0
    %403 = vmatpush.xpose.msra.mxu0 0.0
    %404 = vmatpush.xpose.msra.mxu0 0.0
    %405 = vmatpush.xpose.msra.mxu0 0.0
    %406 = vmatpush.xpose.msra.mxu0 0.0
    %407 = vmatpush.xpose.msra.mxu0 0.0
    %408 = vmatpush.xpose.msra.mxu0 0.0
    %409 = vmatpush.xpose.msra.mxu0 0.0
    %410 = vmatpush.xpose.msra.mxu0 0.0
    %411 = vmatpush.xpose.msra.mxu0 0.0
    %412 = vmatpush.xpose.msra.mxu0 0.0
    %413 = vmatpush.xpose.msra.mxu0 0.0
    %414 = vmatpush.xpose.msra.mxu0 0.0
    %415 = vmatpush.xpose.msra.mxu0 0.0
    %416 = vmatpush.xpose.msra.mxu0 0.0
    %417 = vmatpush.xpose.msra.mxu0 %v400
    %418 = vmatmul.f32.gmra.mxu0 %v398
    %v419 = vpop.f32.mrf.mxu0
    %v420 = vadd.f32 0.0, %v419
    %421 = vdwg.mxu0
    %v422 = vmul.f32 %v420, 0.35355338
    %v423 = vsel %vm239, %v422, -inf
    %424 = vmax.xlane.f32.xlu0 %v423
    %v425 = vpop.xlane.xlu0 %424
    %v426 = vsub.f32 %v422, %v425
    %v427 = vmul.f32 %v426, 1.442695
    %v428 = vpow.pop %v427
    %v429 = vsel %vm239, %v428, 0.0
    %430 = vadd.xlane.f32.xlu0 %v429
    %v431 = vpop.xlane.xlu0 %430
    %v432 = vrcp.pop %v431
    %v433 = vmul.f32 %v431, %v432
    %v434 = vsub.f32 1.0, %v433
    %v435 = vmul.f32 %v432, %v434
    %v436 = vadd.f32 %v432, %v435
    %vm437 = vweird.f32 %v431
    %vm438 = vweird.f32 %v432
    %vm439 = vmor %vm437, %vm438
    %v440 = vsel %vm439, %v432, %v436
    %v441 = vand.u32 2147483647, %v431
    %vm442 = vcmp.eq.f32.partialorder %v441, 8.507059e+37
    %v443 = vand.u32 %v431, 2147483648
    %v444 = vor.u32 1.1754944e-38, %v443
    %v445 = vsel %vm442, %v444, %v440
    %v446 = vmul.f32 %v428, %v445
    %447 = vrot.lane.b32.xlu0 %v237, 112
    %v448 = vpop.permute.xlu0 %447
    %v451 = vsel %vm239, %v446, 0
    %453 = vmatpush.msra.mxu0 0.0
    %454 = vmatpush.msra.mxu0 0.0
    %455 = vmatpush.msra.mxu0 0.0
    %456 = vmatpush.msra.mxu0 0.0
    %457 = vmatpush.msra.mxu0 0.0
    %458 = vmatpush.msra.mxu0 0.0
    %459 = vmatpush.msra.mxu0 0.0
    %460 = vmatpush.msra.mxu0 0.0
    %461 = vmatpush.msra.mxu0 0.0
    %462 = vmatpush.msra.mxu0 0.0
    %463 = vmatpush.msra.mxu0 0.0
    %464 = vmatpush.msra.mxu0 0.0
    %465 = vmatpush.msra.mxu0 0.0
    %466 = vmatpush.msra.mxu0 0.0
    %467 = vmatpush.msra.mxu0 0.0
    %468 = vmatpush.msra.mxu0 %v448
    %469 = vmatmul.f32.gmra.mxu0 %v451
    %v470 = vpop.f32.mrf.mxu0
    %v471 = vadd.f32 0.0, %v470
    %472 = vdwg.mxu0
    %473 = vrot.lane.b32.xlu0 %v175, 104
    %v474 = vpop.permute.xlu0 %473
    %475 = vrot.lane.b32.xlu0 %v206, 104
    %v476 = vpop.permute.xlu0 %475
    %v477 = vsel %vm239, %v474, 0
    %v479 = vsel %vm239, %v476, 0
    %481 = vmatpush.xpose.msra.mxu0 0.0
    %482 = vmatpush.xpose.msra.mxu0 0.0
    %483 = vmatpush.xpose.msra.mxu0 0.0
    %484 = vmatpush.xpose.msra.mxu0 0.0
    %485 = vmatpush.xpose.msra.mxu0 0.0
    %486 = vmatpush.xpose.msra.mxu0 0.0
    %487 = vmatpush.xpose.msra.mxu0 0.0
    %488 = vmatpush.xpose.msra.mxu0 0.0
    %489 = vmatpush.xpose.msra.mxu0 0.0
    %490 = vmatpush.xpose.msra.mxu0 0.0
    %491 = vmatpush.xpose.msra.mxu0 0.0
    %492 = vmatpush.xpose.msra.mxu0 0.0
    %493 = vmatpush.xpose.msra.mxu0 0.0
    %494 = vmatpush.xpose.msra.mxu0 0.0
    %495 = vmatpush.xpose.msra.mxu0 0.0
    %496 = vmatpush.xpose.msra.mxu0 %v479
    %497 = vmatmul.f32.gmra.mxu0 %v477
    %v498 = vpop.f32.mrf.mxu0
    %v499 = vadd.f32 0.0, %v498
    %500 = vdwg.mxu0
    %v501 = vmul.f32 %v499, 0.35355338
    %v502 = vsel %vm239, %v501, -inf
    %503 = vmax.xlane.f32.xlu0 %v502
    %v504 = vpop.xlane.xlu0 %503
    %v505 = vsub.f32 %v501, %v504
    %v506 = vmul.f32 %v505, 1.442695
    %v507 = vpow.pop %v506
    %v508 = vsel %vm239, %v507, 0.0
    %509 = vadd.xlane.f32.xlu0 %v508
    %v510 = vpop.xlane.xlu0 %509
    %v511 = vrcp.pop %v510
    %v512 = vmul.f32 %v510, %v511
    %v513 = vsub.f32 1.0, %v512
    %v514 = vmul.f32 %v511, %v513
    %v515 = vadd.f32 %v511, %v514
    %vm516 = vweird.f32 %v510
    %vm517 = vweird.f32 %v511
    %vm518 = vmor %vm516, %vm517
    %v519 = vsel %vm518, %v511, %v515
    %v520 = vand.u32 2147483647, %v510
    %vm521 = vcmp.eq.f32.partialorder %v520, 8.507059e+37
    %v522 = vand.u32 %v510, 2147483648
    %v523 = vor.u32 1.1754944e-38, %v522
    %v524 = vsel %vm521, %v523, %v519
    %v525 = vmul.f32 %v507, %v524
    %526 = vrot.lane.b32.xlu0 %v237, 104
    %v527 = vpop.permute.xlu0 %526
    %v530 = vsel %vm239, %v525, 0
    %532 = vmatpush.msra.mxu0 0.0
    %533 = vmatpush.msra.mxu0 0.0
    %534 = vmatpush.msra.mxu0 0.0
    %535 = vmatpush.msra.mxu0 0.0
    %536 = vmatpush.msra.mxu0 0.0
    %537 = vmatpush.msra.mxu0 0.0
    %538 = vmatpush.msra.mxu0 0.0
    %539 = vmatpush.msra.mxu0 0.0
    %540 = vmatpush.msra.mxu0 0.0
    %541 = vmatpush.msra.mxu0 0.0
    %542 = vmatpush.msra.mxu0 0.0
    %543 = vmatpush.msra.mxu0 0.0
    %544 = vmatpush.msra.mxu0 0.0
    %545 = vmatpush.msra.mxu0 0.0
    %546 = vmatpush.msra.mxu0 0.0
    %547 = vmatpush.msra.mxu0 %v527
    %548 = vmatmul.f32.gmra.mxu0 %v530
    %v549 = vpop.f32.mrf.mxu0
    %v550 = vadd.f32 0.0, %v549
    %551 = vdwg.mxu0
    %553 = vrot.lane.b32.xlu0 %v392, 8
    %v554 = vpop.permute.xlu0 %553
    %557 = vrot.lane.b32.xlu0 %v471, 16
    %v558 = vpop.permute.xlu0 %557
    %561 = vrot.lane.b32.xlu0 %v550, 24
    %v562 = vpop.permute.xlu0 %561
    %v564 = vsel %vm239, %v312, %v554
    %vm565 = vcmask 130048
    %v566 = vsel %vm565, %v564, %v558
    %vm567 = vcmask 195584
    %v568 = vsel %vm567, %v566, %v562
    %v569 = vld [vmem:[#allocation13] sm:$0xff]
    %v570 = vld [vmem:[#allocation13 + $0x8] sm:$0xff]
    %v571 = vld [vmem:[#allocation13 + $0x10] sm:$0xff]
    %v572 = vld [vmem:[#allocation13 + $0x18] sm:$0xff]
    %v573 = vld [vmem:[%s10] sm:$0x1]
    %v575 = vperm.slane %v573, 0
    %v578 = vsel %vm153, %v568, 0
    %580 = vmatpush.msra.mxu0 0.0
    %581 = vmatpush.msra.mxu0 0.0
    %582 = vmatpush.msra.mxu0 0.0
    %583 = vmatpush.msra.mxu0 0.0
    %584 = vmatpush.msra.mxu0 0.0
    %585 = vmatpush.msra.mxu0 0.0
    %586 = vmatpush.msra.mxu0 0.0
    %587 = vmatpush.msra.mxu0 0.0
    %588 = vmatpush.msra.mxu0 0.0
    %589 = vmatpush.msra.mxu0 0.0
    %590 = vmatpush.msra.mxu0 0.0
    %591 = vmatpush.msra.mxu0 0.0
    %592 = vmatpush.msra.mxu0 %v572
    %593 = vmatpush.msra.mxu0 %v571
    %594 = vmatpush.msra.mxu0 %v570
    %595 = vmatpush.msra.mxu0 %v569
    %596 = vmatmul.f32.gmra.mxu0 %v578
    %v597 = vpop.f32.mrf.mxu0
    %v598 = vadd.f32 %v575, %v597
    %599 = vdwg.mxu0
    %600 = vst.msk [vmem:[#allocation14] sm:$0xff] %vm153, %v598
    // Predicated region
    $region74: #{tpu_custom_call.1} parent=1 // pred_check
      _
    $region75: #{tpu_custom_call.1} parent=1 // pred_check_branch
      %602 = sbr.rel (0) target = $region77
    $region76: #{tpu_custom_call.1} parent=1 // pred_region
      %604 = vsyncadd [#allocation4], 0
      %s606 = sshll.u32 [#allocation14], 4
      %s607 = int_to_ptr.vmem [resolvable:$true] %s606
      %s608 = sshll.u32 %s11, 4
      %s609 = int_to_ptr.hbm [resolvable:$true] %s608
      %611 = dma.vmem_to_hbm [thread:$0]  %s607, 128, %s609, [#allocation4]
    $region77: #{tpu_custom_call.1} parent=1 // pred_fallthru
      _
    // Predicated region
    $region78: #{tpu_custom_call.1} parent=1 // pred_check
      _
    $region79: #{tpu_custom_call.1} parent=1 // pred_check_branch
      %613 = sbr.rel (0) target = $region81
    $region80: #{tpu_custom_call.1} parent=1 // pred_region
      %615 = dma.done [#allocation4], 128
    $region81: #{tpu_custom_call.1} parent=1 // pred_fallthru
      _
    %616 = vsyncpa [#allocation3], 1
    %617 = vsyncpa [#allocation6], 1
    %618 = vsyncpa [#allocation9], 1
    %619 = vsyncpa [#allocation12], 1
    %620 = vsyncpa [#allocation4], 1

</llo_original>
